<compile_context>
chip_gen: v5e
topology: v5e:2x2
jax: 0.10.0
libtpu: 0.0.40
codegen_flags: <defaults>
</compile_context>

<pallas_src>
import functools

import jax
import jax.numpy as jnp
import numpy as np
from jax.experimental import pallas as pl
from jax.experimental.pallas import tpu as pltpu

LANE = 128
SUBLANE = 8
_TILE_VMEM_BUDGET = 20 * 1024 * 1024   # working-set budget used to derive TM
_VMEM_LIMIT_BYTES = 32 * 1024 * 1024   # explicit scoped-VMEM limit (safe on v5e/v6e/v7x)


def _round_up(x, m):
    return ((x + m - 1) // m) * m


def _conv_bn_kernel(xa_ref, xh_ref, w_ref, b_ref, o_ref, band_ref, patch_ref,
                    *, cin, tm, tap_offsets):
    """One lane tile of conv+BN (stride-1 conv as shifted flat windows).

    xa_ref   : (Cin, TM)         flat padded input, columns [m*TM, (m+1)*TM)
    xh_ref   : (Cin, HALO_AL)    halo columns [(m+1)*TM, (m+1)*TM + HALO_AL)
    w_ref    : (Cout_p, K*Cin)   BN-scale-folded weights (resident, tap-major rows)
    b_ref    : (Cout_p, 1)       folded BN bias (resident)
    o_ref    : (Cout_p, TM)      lane-dense output tile
    band_ref : (Cin, TM+HALO_AL) VMEM scratch: contiguous band
    patch_ref: (K*Cin, TM)       VMEM scratch: in-VMEM im2col
    """
    # Stitch tile + halo into one contiguous band (aligned static stores).
    band_ref[:, :tm] = xa_ref[...]
    band_ref[:, tm:] = xh_ref[...]
    # In-VMEM im2col: each tap is a static shifted slice of the flat band.
    for t, off in enumerate(tap_offsets):
        patch_ref[t * cin:(t + 1) * cin, :] = band_ref[:, off:off + tm]
    # Single MXU matmul over the full K*Cin contraction, f32 accumulation.
    acc = jnp.dot(w_ref[...], patch_ref[...], preferred_element_type=jnp.float32)
    o_ref[...] = (acc + b_ref[...]).astype(o_ref.dtype)


def basic_conv2d(x_nchw, weight, gamma, beta, running_mean, running_var, *,
                 stride=1, padding=0, dilation=1, eps=1e-5,
                 compute_dtype=jnp.bfloat16):
    """Conv2d (no bias) + BatchNorm2d (eval), matching BasicConv2d.forward."""
    N, Cin, H, W = x_nchw.shape
    Cout, Cin_w, KH, KW = weight.shape
    assert Cin_w == Cin
    if stride != 1:
        # TODO(synk): stride > 1 needs strided lane windows (or the old gather
        # path); the module default and the given config use stride=1.
        raise NotImplementedError("Pallas basic_conv2d supports stride=1 only")

    H_pad, W_pad = H + 2 * padding, W + 2 * padding
    H_out = H_pad - dilation * (KH - 1)
    W_out = W_pad - dilation * (KW - 1)
    assert H_out > 0 and W_out > 0
    S_pad = H_pad * W_pad
    K = KH * KW
    KCin = K * Cin
    out_dtype = x_nchw.dtype

    # Flat tap offsets (row-major, W_pad-wide padded coordinates), tap-major.
    tap_offsets = tuple(kh * dilation * W_pad + kw * dilation
                        for kh in range(KH) for kw in range(KW))
    halo = max(tap_offsets)
    halo_al = _round_up(max(halo, 1), LANE)

    # Sublane-pad Cout so (Cout_p, TM) output stores are dense.
    Cout_p = _round_up(Cout, SUBLANE)

    # ---- KCin/VMEM-aware lane tile size (multiple of halo_al) ----
    bx = jnp.dtype(compute_dtype).itemsize
    bo = jnp.dtype(out_dtype).itemsize
    per_col = (3 * Cin + KCin) * bx + (2 * bo + 4) * Cout_p        # per TM column
    fixed = 3 * Cin * halo_al * bx + Cout_p * (2 * KCin * bx + 8)  # halo + weights
    tm = max(LANE, (_TILE_VMEM_BUDGET - fixed) // per_col)
    tm = min(tm, 8192)
    tm = max(halo_al, (tm // halo_al) * halo_al)
    total_cols = N * S_pad
    tm = min(tm, _round_up(total_cols, halo_al))   # don't over-tile tiny problems
    n_tiles = pl.cdiv(total_cols, tm)
    L_out = n_tiles * tm
    L_in = L_out + tm                              # room for the last halo block

    # ---- flat padded input, batch folded into the lane axis (one copy, no slab)
    x_pad = jnp.pad(x_nchw, ((0, 0), (0, 0), (padding, padding), (padding, padding)))
    x_flat = jnp.transpose(x_pad, (1, 0, 2, 3)).reshape(Cin, N * S_pad)
    x_flat = jnp.pad(x_flat, ((0, 0), (0, L_in - N * S_pad))).astype(compute_dtype)

    # ---- fold eval-mode BatchNorm into the weights / a per-channel bias ----
    scale = gamma / jnp.sqrt(running_var + eps)                       # (Cout,)
    w_taps = jnp.transpose(weight, (0, 2, 3, 1)).reshape(Cout, KCin)  # tap-major rows
    w_folded = w_taps * scale[:, None]
    bias = beta - running_mean * scale
    if Cout_p != Cout:
        w_folded = jnp.pad(w_folded, ((0, Cout_p - Cout), (0, 0)))
        bias = jnp.pad(bias, ((0, Cout_p - Cout),))
    w_folded = w_folded.astype(compute_dtype)
    bias2d = bias.reshape(Cout_p, 1).astype(jnp.float32)

    kernel = functools.partial(_conv_bn_kernel, cin=Cin, tm=tm,
                               tap_offsets=tap_offsets)

    halo_blocks_per_tile = tm // halo_al
    cost = pl.CostEstimate(
        flops=2 * Cout_p * KCin * L_out,
        transcendentals=0,
        bytes_accessed=(Cin * (L_out + n_tiles * halo_al) * bx
                        + Cout_p * KCin * bx + Cout_p * L_out * bo))

    out_wide = pl.pallas_call(
        kernel,
        out_shape=jax.ShapeDtypeStruct((Cout_p, L_out), out_dtype),
        grid_spec=pltpu.PrefetchScalarGridSpec(
            num_scalar_prefetch=0,
            grid=(n_tiles,),
            in_specs=[
                # main tile + small halo tile of the flat input (auto-pipelined)
                pl.BlockSpec((Cin, tm), lambda m: (0, m)),
                pl.BlockSpec((Cin, halo_al),
                             lambda m: (0, (m + 1) * halo_blocks_per_tile)),
                # resident constants (index (0,0) for every step -> fetched once)
                pl.BlockSpec((Cout_p, KCin), lambda m: (0, 0)),
                pl.BlockSpec((Cout_p, 1), lambda m: (0, 0)),
            ],
            out_specs=pl.BlockSpec((Cout_p, tm), lambda m: (0, m)),
            scratch_shapes=[
                pltpu.VMEM((Cin, tm + halo_al), compute_dtype),   # band
                pltpu.VMEM((KCin, tm), compute_dtype),            # in-VMEM im2col
            ],
        ),
        compiler_params=pltpu.CompilerParams(
            dimension_semantics=("parallel",),      # single axis -> megacore-friendly
            vmem_limit_bytes=_VMEM_LIMIT_BYTES,
        ),
        cost_estimate=cost,
    )(x_flat, x_flat, w_folded, bias2d)

    # Valid outputs live at flat index n*S_pad + ho*W_pad + wo (ho<H_out, wo<W_out).
    # Everything else (right/bottom halo columns, lane padding, padded channels)
    # is garbage and is dropped here; never consume out_wide directly.
    out = out_wide[:Cout, :N * S_pad].reshape(Cout, N, H_pad, W_pad)
    out = out[:, :, :H_out, :W_out]
    return jnp.transpose(out, (1, 0, 2, 3))


if __name__ == "__main__":
    # Module config: in_planes=4, out_planes=8, kernel_size=3, stride=1, padding=1
    in_planes, out_planes, ksize = 4, 8, 3
    stride, padding, dilation = 1, 1, 1

    key = jax.random.PRNGKey(0)
    kx, kw = jax.random.split(key)
    x = jax.random.normal(kx, (2, in_planes, 16, 16), dtype=jnp.float32)
    weight = 0.1 * jax.random.normal(
        kw, (out_planes, in_planes, ksize, ksize), dtype=jnp.float32)

    # Deterministic, non-trivial BatchNorm2d eval-mode state (exercises folding).
    gamma = jnp.linspace(0.5, 1.5, out_planes, dtype=jnp.float32)
    beta = jnp.linspace(-0.2, 0.2, out_planes, dtype=jnp.float32)
    running_mean = jnp.linspace(-0.1, 0.1, out_planes, dtype=jnp.float32)
    running_var = jnp.linspace(0.5, 1.5, out_planes, dtype=jnp.float32)

    y = basic_conv2d(x, weight, gamma, beta, running_mean, running_var,
                     stride=stride, padding=padding, dilation=dilation)
    y = jax.block_until_ready(y)

    # Reference: XLA conv + eval-mode BN (the module's exact math, f32).
    ref_conv = jax.lax.conv_general_dilated(
        x, weight, window_strides=(stride, stride),
        padding=[(padding, padding), (padding, padding)],
        rhs_dilation=(dilation, dilation),
        dimension_numbers=("NCHW", "OIHW", "NCHW"))
    eps = 1e-5
    scale = gamma / jnp.sqrt(running_var + eps)
    ref = (ref_conv * scale[None, :, None, None]
           + (beta - running_mean * scale)[None, :, None, None])

    # bf16 input/weight streams with f32 accumulation -> relaxed tolerance.
    np.testing.assert_allclose(np.asarray(y), np.asarray(ref), atol=3e-2, rtol=3e-2)
    print("KERNEL_OK")
</pallas_src>

<mosaic_0001>
module attributes {stable_mosaic.version = 11 : i64} {
  func.func @_conv_bn_kernel(%arg0: i32, %arg1: memref<4x768xbf16, #tpu.memory_space<vmem>>, %arg2: memref<4x128xbf16, #tpu.memory_space<vmem>>, %arg3: memref<8x36xbf16, #tpu.memory_space<vmem>>, %arg4: memref<8x1xf32, #tpu.memory_space<vmem>>, %arg5: memref<8x768xf32, #tpu.memory_space<vmem>>, %arg6: memref<4x896xbf16, #tpu.memory_space<vmem>>, %arg7: memref<36x768xbf16, #tpu.memory_space<vmem>>) attributes {dimension_semantics = [#tpu.dimension_semantics<parallel>], iteration_bounds = array<i64: 1>, scalar_prefetch = 0 : i64, scratch_operands = 2 : i64, tpu.core_type = #tpu.core_type<tc>, window_params = [{transform_indices = @transform_0, window_bounds = array<i64: 4, 768>}, {transform_indices = @transform_1, window_bounds = array<i64: 4, 128>}, {pipeline_mode = #tpu.pipeline_mode<synchronous>, transform_indices = @transform_2, window_bounds = array<i64: 8, 36>}, {pipeline_mode = #tpu.pipeline_mode<synchronous>, transform_indices = @transform_3, window_bounds = array<i64: 8, 1>}, {transform_indices = @transform_4, window_bounds = array<i64: 8, 768>}]} {
    %c0 = arith.constant 0 : index
    %c0_0 = arith.constant 0 : index
    %0 = vector.load %arg1[%c0, %c0_0] : memref<4x768xbf16, #tpu.memory_space<vmem>>, vector<4x768xbf16>
    %c0_1 = arith.constant 0 : index
    %c0_2 = arith.constant 0 : index
    %1 = vector.load %arg6[%c0_1, %c0_2] : memref<4x896xbf16, #tpu.memory_space<vmem>>, vector<4x768xbf16>
    tpu.vector_store %arg6[%c0_1, %c0_2], %0 {strides = array<i32>} : memref<4x896xbf16, #tpu.memory_space<vmem>>, vector<4x768xbf16>,
    %c0_3 = arith.constant 0 : index
    %c0_4 = arith.constant 0 : index
    %2 = vector.load %arg2[%c0_3, %c0_4] : memref<4x128xbf16, #tpu.memory_space<vmem>>, vector<4x128xbf16>
    %c0_5 = arith.constant 0 : index
    %c768 = arith.constant 768 : index
    %3 = vector.load %arg6[%c0_5, %c768] : memref<4x896xbf16, #tpu.memory_space<vmem>>, vector<4x128xbf16>
    tpu.vector_store %arg6[%c0_5, %c768], %2 {strides = array<i32>} : memref<4x896xbf16, #tpu.memory_space<vmem>>, vector<4x128xbf16>,
    %c0_6 = arith.constant 0 : index
    %c0_7 = arith.constant 0 : index
    %4 = vector.load %arg6[%c0_6, %c0_7] : memref<4x896xbf16, #tpu.memory_space<vmem>>, vector<4x768xbf16>
    %c0_8 = arith.constant 0 : index
    %c0_9 = arith.constant 0 : index
    %5 = vector.load %arg7[%c0_8, %c0_9] : memref<36x768xbf16, #tpu.memory_space<vmem>>, vector<4x768xbf16>
    tpu.vector_store %arg7[%c0_8, %c0_9], %4 {strides = array<i32>} : memref<36x768xbf16, #tpu.memory_space<vmem>>, vector<4x768xbf16>,
    %c0_10 = arith.constant 0 : index
    %c1 = arith.constant 1 : index
    %6 = vector.load %arg6[%c0_10, %c1] : memref<4x896xbf16, #tpu.memory_space<vmem>>, vector<4x768xbf16>
    %c4 = arith.constant 4 : index
    %c0_11 = arith.constant 0 : index
    %7 = vector.load %arg7[%c4, %c0_11] : memref<36x768xbf16, #tpu.memory_space<vmem>>, vector<4x768xbf16>
    tpu.vector_store %arg7[%c4, %c0_11], %6 {strides = array<i32>} : memref<36x768xbf16, #tpu.memory_space<vmem>>, vector<4x768xbf16>,
    %c0_12 = arith.constant 0 : index
    %c2 = arith.constant 2 : index
    %8 = vector.load %arg6[%c0_12, %c2] : memref<4x896xbf16, #tpu.memory_space<vmem>>, vector<4x768xbf16>
    %c8 = arith.constant 8 : index
    %c0_13 = arith.constant 0 : index
    %9 = vector.load %arg7[%c8, %c0_13] : memref<36x768xbf16, #tpu.memory_space<vmem>>, vector<4x768xbf16>
    tpu.vector_store %arg7[%c8, %c0_13], %8 {strides = array<i32>} : memref<36x768xbf16, #tpu.memory_space<vmem>>, vector<4x768xbf16>,
    %c0_14 = arith.constant 0 : index
    %c18 = arith.constant 18 : index
    %10 = vector.load %arg6[%c0_14, %c18] : memref<4x896xbf16, #tpu.memory_space<vmem>>, vector<4x768xbf16>
    %c12 = arith.constant 12 : index
    %c0_15 = arith.constant 0 : index
    %11 = vector.load %arg7[%c12, %c0_15] : memref<36x768xbf16, #tpu.memory_space<vmem>>, vector<4x768xbf16>
    tpu.vector_store %arg7[%c12, %c0_15], %10 {strides = array<i32>} : memref<36x768xbf16, #tpu.memory_space<vmem>>, vector<4x768xbf16>,
    %c0_16 = arith.constant 0 : index
    %c19 = arith.constant 19 : index
    %12 = vector.load %arg6[%c0_16, %c19] : memref<4x896xbf16, #tpu.memory_space<vmem>>, vector<4x768xbf16>
    %c16 = arith.constant 16 : index
    %c0_17 = arith.constant 0 : index
    %13 = vector.load %arg7[%c16, %c0_17] : memref<36x768xbf16, #tpu.memory_space<vmem>>, vector<4x768xbf16>
    tpu.vector_store %arg7[%c16, %c0_17], %12 {strides = array<i32>} : memref<36x768xbf16, #tpu.memory_space<vmem>>, vector<4x768xbf16>,
    %c0_18 = arith.constant 0 : index
    %c20 = arith.constant 20 : index
    %14 = vector.load %arg6[%c0_18, %c20] : memref<4x896xbf16, #tpu.memory_space<vmem>>, vector<4x768xbf16>
    %c20_19 = arith.constant 20 : index
    %c0_20 = arith.constant 0 : index
    %15 = vector.load %arg7[%c20_19, %c0_20] : memref<36x768xbf16, #tpu.memory_space<vmem>>, vector<4x768xbf16>
    tpu.vector_store %arg7[%c20_19, %c0_20], %14 {strides = array<i32>} : memref<36x768xbf16, #tpu.memory_space<vmem>>, vector<4x768xbf16>,
    %c0_21 = arith.constant 0 : index
    %c36 = arith.constant 36 : index
    %16 = vector.load %arg6[%c0_21, %c36] : memref<4x896xbf16, #tpu.memory_space<vmem>>, vector<4x768xbf16>
    %c24 = arith.constant 24 : index
    %c0_22 = arith.constant 0 : index
    %17 = vector.load %arg7[%c24, %c0_22] : memref<36x768xbf16, #tpu.memory_space<vmem>>, vector<4x768xbf16>
    tpu.vector_store %arg7[%c24, %c0_22], %16 {strides = array<i32>} : memref<36x768xbf16, #tpu.memory_space<vmem>>, vector<4x768xbf16>,
    %c0_23 = arith.constant 0 : index
    %c37 = arith.constant 37 : index
    %18 = vector.load %arg6[%c0_23, %c37] : memref<4x896xbf16, #tpu.memory_space<vmem>>, vector<4x768xbf16>
    %c28 = arith.constant 28 : index
    %c0_24 = arith.constant 0 : index
    %19 = vector.load %arg7[%c28, %c0_24] : memref<36x768xbf16, #tpu.memory_space<vmem>>, vector<4x768xbf16>
    tpu.vector_store %arg7[%c28, %c0_24], %18 {strides = array<i32>} : memref<36x768xbf16, #tpu.memory_space<vmem>>, vector<4x768xbf16>,
    %c0_25 = arith.constant 0 : index
    %c38 = arith.constant 38 : index
    %20 = vector.load %arg6[%c0_25, %c38] : memref<4x896xbf16, #tpu.memory_space<vmem>>, vector<4x768xbf16>
    %c32 = arith.constant 32 : index
    %c0_26 = arith.constant 0 : index
    %21 = vector.load %arg7[%c32, %c0_26] : memref<36x768xbf16, #tpu.memory_space<vmem>>, vector<4x768xbf16>
    tpu.vector_store %arg7[%c32, %c0_26], %20 {strides = array<i32>} : memref<36x768xbf16, #tpu.memory_space<vmem>>, vector<4x768xbf16>,
    %c0_27 = arith.constant 0 : index
    %c0_28 = arith.constant 0 : index
    %22 = vector.load %arg3[%c0_27, %c0_28] : memref<8x36xbf16, #tpu.memory_space<vmem>>, vector<8x36xbf16>
    %c0_29 = arith.constant 0 : index
    %c0_30 = arith.constant 0 : index
    %23 = vector.load %arg7[%c0_29, %c0_30] : memref<36x768xbf16, #tpu.memory_space<vmem>>, vector<36x768xbf16>
    %cst = arith.constant dense<0.000000e+00> : vector<8x768xf32>
    %24 = tpu.matmul %22, %23, %cst {dimension_numbers = #tpu.dot_dimension_numbers<[1], [0], [0], [1], [0, 0, 1, 1], [], []>} : vector<8x36xbf16>, vector<36x768xbf16>, vector<8x768xf32> -> vector<8x768xf32>
    %c0_31 = arith.constant 0 : index
    %c0_32 = arith.constant 0 : index
    %25 = vector.load %arg4[%c0_31, %c0_32] : memref<8x1xf32, #tpu.memory_space<vmem>>, vector<8x1xf32>
    %26 = vector.broadcast %25 : vector<8x1xf32> to vector<8x768xf32>
    %27 = arith.addf %24, %26 : vector<8x768xf32>
    %c0_33 = arith.constant 0 : index
    %c0_34 = arith.constant 0 : index
    %28 = vector.load %arg5[%c0_33, %c0_34] : memref<8x768xf32, #tpu.memory_space<vmem>>, vector<8x768xf32>
    tpu.vector_store %arg5[%c0_33, %c0_34], %27 {strides = array<i32>} : memref<8x768xf32, #tpu.memory_space<vmem>>, vector<8x768xf32>,
    return
  }
  func.func @transform_0(%arg0: i32) -> (i32, i32) {
    %c0_i32 = arith.constant 0 : i32
    %c0_i32_0 = arith.constant 0 : i32
    return %c0_i32, %arg0 : i32, i32
  }
  func.func @transform_1(%arg0: i32) -> (i32, i32) {
    %c1_i32 = arith.constant 1 : i32
    %0 = arith.addi %arg0, %c1_i32 : i32
    %c6_i32 = arith.constant 6 : i32
    %1 = arith.muli %0, %c6_i32 : i32
    %c0_i32 = arith.constant 0 : i32
    %c0_i32_0 = arith.constant 0 : i32
    return %c0_i32, %1 : i32, i32
  }
  func.func @transform_2(%arg0: i32) -> (i32, i32) {
    %c0_i32 = arith.constant 0 : i32
    %c0_i32_0 = arith.constant 0 : i32
    %c0_i32_1 = arith.constant 0 : i32
    return %c0_i32, %c0_i32_0 : i32, i32
  }
  func.func @transform_3(%arg0: i32) -> (i32, i32) {
    %c0_i32 = arith.constant 0 : i32
    %c0_i32_0 = arith.constant 0 : i32
    %c0_i32_1 = arith.constant 0 : i32
    return %c0_i32, %c0_i32_0 : i32, i32
  }
  func.func @transform_4(%arg0: i32) -> (i32, i32) {
    %c0_i32 = arith.constant 0 : i32
    %c0_i32_0 = arith.constant 0 : i32
    return %c0_i32, %arg0 : i32, i32
  }
}

</mosaic_0001>

<llo_original>
// kernel: tpu_custom_call.1
$region0: #{tpu_custom_call.1}
  #allocation0 [shape = 'u32[]', space=smem, size = 0x4, offset = 0x4, fixed_abs, tag = 'smem constant byte address 0x4 - core index']
  #allocation1 [shape = 'u32[72,128]{1,0:T(1,128)}', space=vmem, size = 0x9000, scoped, tag = 'internal scratch']
  #allocation2 [shape = 'bf16[4,896]{1,0:T(4,128)(2,1)}', space=vmem, size = 0x1c00, scoped, tag = 'scratch operand']
  #allocation3 [shape = 'bf16[36,768]{1,0:T(8,128)(2,1)}', space=vmem, size = 0xf000, scoped, tag = 'scratch operand']
  %s0 = inlined_call_operand.hbm [shape: bf16[4,1536], index: 0, kind: input, shape index: {}]
  %s1 = inlined_call_operand.hbm [shape: bf16[4,1536], index: 1, kind: input, shape index: {}]
  %s2 = inlined_call_operand.vmem [shape: bf16[8,36], index: 2, kind: input, shape index: {}]
  %s3 = inlined_call_operand.vmem [shape: f32[8,1], index: 3, kind: input, shape index: {}]
  %s4 = inlined_call_operand.hbm [shape: f32[8,768], index: 4, kind: output, shape index: {}]
  %s5 = sld [smem:[#allocation0]]
  $region34: #{tpu_custom_call.1} parent=0
    _
  %s7 = ssub.s32 1, %s5
  %s8 = scalar_select 0, %s7, %s5
  $region1: #{tpu_custom_call.1} parent=0
    #allocation4 [shape = 'u8[6144]{0}', space=vmem, size = 0x1800, scoped, tag = 'input window, operand 0, single buffered']
    #allocation5 [shape = 's32[1]{0}', space=sflag, size = 0x4, scoped, tag = 'scoped memory for tpu_custom_call.1']
    #allocation6 [shape = 's32[1]{0}', space=sflag, size = 0x4, scoped, tag = 'scoped memory for tpu_custom_call.1']
    #allocation7 [shape = 'u8[1024]{0}', space=vmem, size = 0x400, scoped, tag = 'input window, operand 1, single buffered']
    #allocation8 [shape = 's32[1]{0}', space=sflag, size = 0x4, scoped, tag = 'scoped memory for tpu_custom_call.1']
    #allocation9 [shape = 'u8[24576]{0}', space=vmem, size = 0x6000, scoped, tag = 'output window, operand 0, single buffered']
    %9 = vsyncpa [#allocation5], 0
    %10 = vsyncpa [#allocation8], 0
    %11 = vsyncpa [#allocation6], 0
    // Predicated region
    $region2: #{tpu_custom_call.1} parent=1 // pred_check
      _
    $region3: #{tpu_custom_call.1} parent=1 // pred_check_branch
      %13 = sbr.rel (0) target = $region5
    $region4: #{tpu_custom_call.1} parent=1 // pred_region
      %15 = vsyncadd [#allocation5], 0
      %s17 = sshll.u32 %s0, 4
      %s18 = int_to_ptr.hbm [resolvable:$true] %s17
      %s19 = sshll.u32 [#allocation4], 4
      %s20 = int_to_ptr.vmem [resolvable:$true] %s19
      %22 = dma.hbm_to_vmem [thread:$0]  %s18, 192, %s20, [#allocation5]
    $region5: #{tpu_custom_call.1} parent=1 // pred_fallthru
      _
    // Predicated region
    $region6: #{tpu_custom_call.1} parent=1 // pred_check
      _
    $region7: #{tpu_custom_call.1} parent=1 // pred_check_branch
      %24 = sbr.rel (0) target = $region9
    $region8: #{tpu_custom_call.1} parent=1 // pred_region
      %s25 = sadd.s32 0, 1
      %s26 = smul.u32 %s25, 6
      %28 = vsyncadd [#allocation8], 0
      %s29 = smul.addr %s26, 2
      %s30 = scalar_lea.hbm %s1, %s29
      %s32 = sshll.u32 %s30, 4
      %s33 = int_to_ptr.hbm [resolvable:$true] %s32
      %s34 = sshll.u32 [#allocation7], 4
      %s35 = int_to_ptr.vmem [resolvable:$true] %s34
      %37 = dma.hbm_to_vmem [thread:$0]  %s33, 32, %s35, [#allocation8]
    $region9: #{tpu_custom_call.1} parent=1 // pred_fallthru
      _
    // Predicated region
    $region10: #{tpu_custom_call.1} parent=1 // pred_check
      _
    $region11: #{tpu_custom_call.1} parent=1 // pred_check_branch
      %39 = sbr.rel (0) target = $region13
    $region12: #{tpu_custom_call.1} parent=1 // pred_region
      _
    $region13: #{tpu_custom_call.1} parent=1 // pred_fallthru
      _
    // Predicated region
    $region14: #{tpu_custom_call.1} parent=1 // pred_check
      _
    $region15: #{tpu_custom_call.1} parent=1 // pred_check_branch
      %41 = sbr.rel (0) target = $region17
    $region16: #{tpu_custom_call.1} parent=1 // pred_region
      _
    $region17: #{tpu_custom_call.1} parent=1 // pred_fallthru
      _
    // Predicated region
    $region18: #{tpu_custom_call.1} parent=1 // pred_check
      _
    $region19: #{tpu_custom_call.1} parent=1 // pred_check_branch
      %43 = sbr.rel (0) target = $region21
    $region20: #{tpu_custom_call.1} parent=1 // pred_region
      %45 = dma.done [#allocation5], 192
    $region21: #{tpu_custom_call.1} parent=1 // pred_fallthru
      _
    // Predicated region
    $region22: #{tpu_custom_call.1} parent=1 // pred_check
      _
    $region23: #{tpu_custom_call.1} parent=1 // pred_check_branch
      %47 = sbr.rel (0) target = $region25
    $region24: #{tpu_custom_call.1} parent=1 // pred_region
      %49 = dma.done [#allocation8], 32
    $region25: #{tpu_custom_call.1} parent=1 // pred_fallthru
      _
    %s50 = sadd.s32 0, 1
    %s51 = smul.u32 %s50, 6
    %v53 = vld [vmem:[#allocation4] sm:$0xff]
    %v54 = vld [vmem:[#allocation4 + $0x8] sm:$0xf]
    %55 = vst [vmem:[#allocation2] sm:$0xff] %v53
    %56 = vst [vmem:[#allocation2 + $0x8] sm:$0xf] %v54
    %v57 = vld [vmem:[#allocation7] sm:$0x3]
    %58 = vst [vmem:[#allocation2 + $0xc] sm:$0x3] %v57
    %v59 = vld [vmem:[#allocation2] sm:$0xff]
    %v60 = vld [vmem:[#allocation2 + $0x8] sm:$0xf]
    %62 = vst [vmem:[#allocation1] ss:$2 sm:$0xff] %v59
    %s64 = scalar_lea.vmem [#allocation1], 16
    %65 = vst [vmem:[%s64] ss:$2 sm:$0xff] %v60
    %v66 = vld.sshfl [vmem:[#allocation1] sm:$0xff pattern:$0x75643120]
    %v67 = vld.sshfl [vmem:[#allocation1 + $0x8] sm:$0xff pattern:$0x75643120]
    %v68 = vld.sshfl [vmem:[#allocation1 + $0x10] sm:$0xff pattern:$0x75643120]
    %72 = vst [vmem:[#allocation3] sm:$0x33] %v66
    %73 = vst [vmem:[#allocation3 + $0x8] sm:$0x33] %v67
    %74 = vst [vmem:[#allocation3 + $0x10] sm:$0x33] %v68
    %v75 = vld [vmem:[#allocation2] sm:$0xff]
    %v76 = vld [vmem:[#allocation2 + $0x8] sm:$0x3f]
    %s78 = scalar_lea.vmem [#allocation1], 1
    %79 = vst [vmem:[%s78] ss:$2 sm:$0xff] %v75
    %s81 = scalar_lea.vmem [#allocation1], 17
    %82 = vst [vmem:[%s81] ss:$2 sm:$0xff] %v76
    %v83 = vld.sshfl [vmem:[#allocation1] sm:$0xff pattern:$0x75643120]
    %v85 = vld.sshfl [vmem:[#allocation1 + $0x8] sm:$0xff pattern:$0x75643120]
    %v87 = vld.sshfl [vmem:[#allocation1 + $0x10] sm:$0xff pattern:$0x75643120]
    %v89 = vld.sshfl [vmem:[#allocation1 + $0x18] sm:$0xff pattern:$0x75643120]
    %91 = vrot.lane.b32.xlu0 %v83, 127
    %v92 = vpop.permute.xlu0 %91
    %93 = vrot.lane.b32.xlu0 %v85, 127
    %v94 = vpop.permute.xlu0 %93
    %95 = vrot.lane.b32.xlu0 %v87, 127
    %v96 = vpop.permute.xlu0 %95
    %97 = vrot.lane.b32.xlu0 %v89, 127
    %v98 = vpop.permute.xlu0 %97
    %v99 = vrot.slane %v92, 4
    %v100 = vrot.slane %v94, 4
    %v101 = vrot.slane %v96, 4
    %v102 = vrot.slane %v98, 4
    %vm103 = vcmask 1043456
    %v104 = vsel %vm103, %v99, %v100
    %vm105 = vcmask 1039360
    %v106 = vsel %vm105, %v92, %v104
    %v107 = vsel %vm103, %v100, %v101
    %v108 = vsel %vm105, %v94, %v107
    %v109 = vsel %vm103, %v101, %v102
    %v110 = vsel %vm105, %v96, %v109
    %114 = vst [vmem:[#allocation3] sm:$0xcc] %v106
    %115 = vst [vmem:[#allocation3 + $0x8] sm:$0xcc] %v108
    %116 = vst [vmem:[#allocation3 + $0x10] sm:$0xcc] %v110
    %v117 = vld [vmem:[#allocation2] sm:$0xff]
    %v118 = vld [vmem:[#allocation2 + $0x8] sm:$0x3f]
    %120 = vst [vmem:[#allocation1] ss:$2 sm:$0xff] %v117
    %s122 = scalar_lea.vmem [#allocation1], 16
    %123 = vst [vmem:[%s122] ss:$2 sm:$0xff] %v118
    %v124 = vld.sshfl [vmem:[#allocation1] sm:$0xff pattern:$0x75643120]
    %v126 = vld.sshfl [vmem:[#allocation1 + $0x8] sm:$0xff pattern:$0x75643120]
    %v128 = vld.sshfl [vmem:[#allocation1 + $0x10] sm:$0xff pattern:$0x75643120]
    %v130 = vld.sshfl [vmem:[#allocation1 + $0x18] sm:$0xff pattern:$0x75643120]
    %132 = vrot.lane.b32.xlu0 %v124, 126
    %v133 = vpop.permute.xlu0 %132
    %134 = vrot.lane.b32.xlu0 %v126, 126
    %v135 = vpop.permute.xlu0 %134
    %136 = vrot.lane.b32.xlu0 %v128, 126
    %v137 = vpop.permute.xlu0 %136
    %138 = vrot.lane.b32.xlu0 %v130, 126
    %v139 = vpop.permute.xlu0 %138
    %v140 = vrot.slane %v133, 4
    %v141 = vrot.slane %v135, 4
    %v142 = vrot.slane %v137, 4
    %v143 = vrot.slane %v139, 4
    %v144 = vsel %vm103, %v140, %v141
    %vm145 = vcmask 1031168
    %v146 = vsel %vm145, %v133, %v144
    %v147 = vsel %vm103, %v141, %v142
    %v148 = vsel %vm145, %v135, %v147
    %v149 = vsel %vm103, %v142, %v143
    %v150 = vsel %vm145, %v137, %v149
    %154 = vst [vmem:[#allocation3 + $0x18] sm:$0x33] %v146
    %155 = vst [vmem:[#allocation3 + $0x20] sm:$0x33] %v148
    %156 = vst [vmem:[#allocation3 + $0x28] sm:$0x33] %v150
    %v157 = vld [vmem:[#allocation2] sm:$0xff]
    %v158 = vld [vmem:[#allocation2 + $0x8] sm:$0x3f]
    %s160 = scalar_lea.vmem [#allocation1], 1
    %161 = vst [vmem:[%s160] ss:$2 sm:$0xff] %v157
    %s163 = scalar_lea.vmem [#allocation1], 17
    %164 = vst [vmem:[%s163] ss:$2 sm:$0xff] %v158
    %v165 = vld.sshfl [vmem:[#allocation1] sm:$0xff pattern:$0x75643120]
    %v167 = vld.sshfl [vmem:[#allocation1 + $0x8] sm:$0xff pattern:$0x75643120]
    %v169 = vld.sshfl [vmem:[#allocation1 + $0x10] sm:$0xff pattern:$0x75643120]
    %v171 = vld.sshfl [vmem:[#allocation1 + $0x18] sm:$0xff pattern:$0x75643120]
    %173 = vrot.lane.b32.xlu0 %v165, 110
    %v174 = vpop.permute.xlu0 %173
    %175 = vrot.lane.b32.xlu0 %v167, 110
    %v176 = vpop.permute.xlu0 %175
    %177 = vrot.lane.b32.xlu0 %v169, 110
    %v178 = vpop.permute.xlu0 %177
    %179 = vrot.lane.b32.xlu0 %v171, 110
    %v180 = vpop.permute.xlu0 %179
    %v181 = vrot.slane %v174, 4
    %v182 = vrot.slane %v176, 4
    %v183 = vrot.slane %v178, 4
    %v184 = vrot.slane %v180, 4
    %v185 = vsel %vm103, %v181, %v182
    %vm186 = vcmask 900096
    %v187 = vsel %vm186, %v174, %v185
    %v188 = vsel %vm103, %v182, %v183
    %v189 = vsel %vm186, %v176, %v188
    %v190 = vsel %vm103, %v183, %v184
    %v191 = vsel %vm186, %v178, %v190
    %195 = vst [vmem:[#allocation3 + $0x18] sm:$0xcc] %v187
    %196 = vst [vmem:[#allocation3 + $0x20] sm:$0xcc] %v189
    %197 = vst [vmem:[#allocation3 + $0x28] sm:$0xcc] %v191
    %v198 = vld [vmem:[#allocation2] sm:$0xff]
    %v199 = vld [vmem:[#allocation2 + $0x8] sm:$0x3f]
    %201 = vst [vmem:[#allocation1] ss:$2 sm:$0xff] %v198
    %s203 = scalar_lea.vmem [#allocation1], 16
    %204 = vst [vmem:[%s203] ss:$2 sm:$0xff] %v199
    %v205 = vld.sshfl [vmem:[#allocation1] sm:$0xff pattern:$0x75643120]
    %v207 = vld.sshfl [vmem:[#allocation1 + $0x8] sm:$0xff pattern:$0x75643120]
    %v209 = vld.sshfl [vmem:[#allocation1 + $0x10] sm:$0xff pattern:$0x75643120]
    %v211 = vld.sshfl [vmem:[#allocation1 + $0x18] sm:$0xff pattern:$0x75643120]
    %213 = vrot.lane.b32.xlu0 %v205, 109
    %v214 = vpop.permute.xlu0 %213
    %215 = vrot.lane.b32.xlu0 %v207, 109
    %v216 = vpop.permute.xlu0 %215
    %217 = vrot.lane.b32.xlu0 %v209, 109
    %v218 = vpop.permute.xlu0 %217
    %219 = vrot.lane.b32.xlu0 %v211, 109
    %v220 = vpop.permute.xlu0 %219
    %v221 = vrot.slane %v214, 4
    %v222 = vrot.slane %v216, 4
    %v223 = vrot.slane %v218, 4
    %v224 = vrot.slane %v220, 4
    %v225 = vsel %vm103, %v221, %v222
    %vm226 = vcmask 891904
    %v227 = vsel %vm226, %v214, %v225
    %v228 = vsel %vm103, %v222, %v223
    %v229 = vsel %vm226, %v216, %v228
    %v230 = vsel %vm103, %v223, %v224
    %v231 = vsel %vm226, %v218, %v230
    %235 = vst [vmem:[#allocation3 + $0x30] sm:$0x33] %v227
    %236 = vst [vmem:[#allocation3 + $0x38] sm:$0x33] %v229
    %237 = vst [vmem:[#allocation3 + $0x40] sm:$0x33] %v231
    %v238 = vld [vmem:[#allocation2] sm:$0xff]
    %v239 = vld [vmem:[#allocation2 + $0x8] sm:$0x3f]
    %s241 = scalar_lea.vmem [#allocation1], 1
    %242 = vst [vmem:[%s241] ss:$2 sm:$0xff] %v238
    %s244 = scalar_lea.vmem [#allocation1], 17
    %245 = vst [vmem:[%s244] ss:$2 sm:$0xff] %v239
    %v246 = vld.sshfl [vmem:[#allocation1] sm:$0xff pattern:$0x75643120]
    %v248 = vld.sshfl [vmem:[#allocation1 + $0x8] sm:$0xff pattern:$0x75643120]
    %v250 = vld.sshfl [vmem:[#allocation1 + $0x10] sm:$0xff pattern:$0x75643120]
    %v252 = vld.sshfl [vmem:[#allocation1 + $0x18] sm:$0xff pattern:$0x75643120]
    %254 = vrot.lane.b32.xlu0 %v246, 108
    %v255 = vpop.permute.xlu0 %254
    %256 = vrot.lane.b32.xlu0 %v248, 108
    %v257 = vpop.permute.xlu0 %256
    %258 = vrot.lane.b32.xlu0 %v250, 108
    %v259 = vpop.permute.xlu0 %258
    %260 = vrot.lane.b32.xlu0 %v252, 108
    %v261 = vpop.permute.xlu0 %260
    %v262 = vrot.slane %v255, 4
    %v263 = vrot.slane %v257, 4
    %v264 = vrot.slane %v259, 4
    %v265 = vrot.slane %v261, 4
    %v266 = vsel %vm103, %v262, %v263
    %vm267 = vcmask 883712
    %v268 = vsel %vm267, %v255, %v266
    %v269 = vsel %vm103, %v263, %v264
    %v270 = vsel %vm267, %v257, %v269
    %v271 = vsel %vm103, %v264, %v265
    %v272 = vsel %vm267, %v259, %v271
    %276 = vst [vmem:[#allocation3 + $0x30] sm:$0xcc] %v268
    %277 = vst [vmem:[#allocation3 + $0x38] sm:$0xcc] %v270
    %278 = vst [vmem:[#allocation3 + $0x40] sm:$0xcc] %v272
    %v279 = vld [vmem:[#allocation2] sm:$0xff]
    %v280 = vld [vmem:[#allocation2 + $0x8] sm:$0x3f]
    %282 = vst [vmem:[#allocation1] ss:$2 sm:$0xff] %v279
    %s284 = scalar_lea.vmem [#allocation1], 16
    %285 = vst [vmem:[%s284] ss:$2 sm:$0xff] %v280
    %v286 = vld.sshfl [vmem:[#allocation1] sm:$0xff pattern:$0x75643120]
    %v288 = vld.sshfl [vmem:[#allocation1 + $0x8] sm:$0xff pattern:$0x75643120]
    %v290 = vld.sshfl [vmem:[#allocation1 + $0x10] sm:$0xff pattern:$0x75643120]
    %v292 = vld.sshfl [vmem:[#allocation1 + $0x18] sm:$0xff pattern:$0x75643120]
    %294 = vrot.lane.b32.xlu0 %v286, 92
    %v295 = vpop.permute.xlu0 %294
    %296 = vrot.lane.b32.xlu0 %v288, 92
    %v297 = vpop.permute.xlu0 %296
    %298 = vrot.lane.b32.xlu0 %v290, 92
    %v299 = vpop.permute.xlu0 %298
    %300 = vrot.lane.b32.xlu0 %v292, 92
    %v301 = vpop.permute.xlu0 %300
    %v302 = vrot.slane %v295, 4
    %v303 = vrot.slane %v297, 4
    %v304 = vrot.slane %v299, 4
    %v305 = vrot.slane %v301, 4
    %v306 = vsel %vm103, %v302, %v303
    %vm307 = vcmask 752640
    %v308 = vsel %vm307, %v295, %v306
    %v309 = vsel %vm103, %v303, %v304
    %v310 = vsel %vm307, %v297, %v309
    %v311 = vsel %vm103, %v304, %v305
    %v312 = vsel %vm307, %v299, %v311
    %316 = vst [vmem:[#allocation3 + $0x48] sm:$0x33] %v308
    %317 = vst [vmem:[#allocation3 + $0x50] sm:$0x33] %v310
    %318 = vst [vmem:[#allocation3 + $0x58] sm:$0x33] %v312
    %v319 = vld [vmem:[#allocation2] sm:$0xff]
    %v320 = vld [vmem:[#allocation2 + $0x8] sm:$0x3f]
    %s322 = scalar_lea.vmem [#allocation1], 1
    %323 = vst [vmem:[%s322] ss:$2 sm:$0xff] %v319
    %s325 = scalar_lea.vmem [#allocation1], 17
    %326 = vst [vmem:[%s325] ss:$2 sm:$0xff] %v320
    %v327 = vld.sshfl [vmem:[#allocation1] sm:$0xff pattern:$0x75643120]
    %v329 = vld.sshfl [vmem:[#allocation1 + $0x8] sm:$0xff pattern:$0x75643120]
    %v331 = vld.sshfl [vmem:[#allocation1 + $0x10] sm:$0xff pattern:$0x75643120]
    %v333 = vld.sshfl [vmem:[#allocation1 + $0x18] sm:$0xff pattern:$0x75643120]
    %335 = vrot.lane.b32.xlu0 %v327, 91
    %v336 = vpop.permute.xlu0 %335
    %337 = vrot.lane.b32.xlu0 %v329, 91
    %v338 = vpop.permute.xlu0 %337
    %339 = vrot.lane.b32.xlu0 %v331, 91
    %v340 = vpop.permute.xlu0 %339
    %341 = vrot.lane.b32.xlu0 %v333, 91
    %v342 = vpop.permute.xlu0 %341
    %v343 = vrot.slane %v336, 4
    %v344 = vrot.slane %v338, 4
    %v345 = vrot.slane %v340, 4
    %v346 = vrot.slane %v342, 4
    %v347 = vsel %vm103, %v343, %v344
    %vm348 = vcmask 744448
    %v349 = vsel %vm348, %v336, %v347
    %v350 = vsel %vm103, %v344, %v345
    %v351 = vsel %vm348, %v338, %v350
    %v352 = vsel %vm103, %v345, %v346
    %v353 = vsel %vm348, %v340, %v352
    %357 = vst [vmem:[#allocation3 + $0x48] sm:$0xcc] %v349
    %358 = vst [vmem:[#allocation3 + $0x50] sm:$0xcc] %v351
    %359 = vst [vmem:[#allocation3 + $0x58] sm:$0xcc] %v353
    %v360 = vld [vmem:[#allocation2] sm:$0xff]
    %v361 = vld [vmem:[#allocation2 + $0x8] sm:$0x3f]
    %363 = vst [vmem:[#allocation1] ss:$2 sm:$0xff] %v360
    %s365 = scalar_lea.vmem [#allocation1], 16
    %366 = vst [vmem:[%s365] ss:$2 sm:$0xff] %v361
    %v367 = vld.sshfl [vmem:[#allocation1] sm:$0xff pattern:$0x75643120]
    %v369 = vld.sshfl [vmem:[#allocation1 + $0x8] sm:$0xff pattern:$0x75643120]
    %v371 = vld.sshfl [vmem:[#allocation1 + $0x10] sm:$0xff pattern:$0x75643120]
    %v373 = vld.sshfl [vmem:[#allocation1 + $0x18] sm:$0xff pattern:$0x75643120]
    %375 = vrot.lane.b32.xlu0 %v367, 90
    %v376 = vpop.permute.xlu0 %375
    %377 = vrot.lane.b32.xlu0 %v369, 90
    %v378 = vpop.permute.xlu0 %377
    %379 = vrot.lane.b32.xlu0 %v371, 90
    %v380 = vpop.permute.xlu0 %379
    %381 = vrot.lane.b32.xlu0 %v373, 90
    %v382 = vpop.permute.xlu0 %381
    %v383 = vrot.slane %v376, 4
    %v384 = vrot.slane %v378, 4
    %v385 = vrot.slane %v380, 4
    %v386 = vrot.slane %v382, 4
    %v387 = vsel %vm103, %v383, %v384
    %vm388 = vcmask 736256
    %v389 = vsel %vm388, %v376, %v387
    %v390 = vsel %vm103, %v384, %v385
    %v391 = vsel %vm388, %v378, %v390
    %v392 = vsel %vm103, %v385, %v386
    %v393 = vsel %vm388, %v380, %v392
    %397 = vst [vmem:[#allocation3 + $0x60] sm:$0x33] %v389
    %398 = vst [vmem:[#allocation3 + $0x68] sm:$0x33] %v391
    %399 = vst [vmem:[#allocation3 + $0x70] sm:$0x33] %v393
    %v400 = vld [vmem:[%s2] sm:$0xf]
    %v401 = vld [vmem:[#allocation3] sm:$0xff]
    %v402 = vld [vmem:[#allocation3 + $0x8] sm:$0xff]
    %v403 = vld [vmem:[#allocation3 + $0x10] sm:$0xff]
    %v404 = vld [vmem:[#allocation3 + $0x18] sm:$0xff]
    %v405 = vld [vmem:[#allocation3 + $0x20] sm:$0xff]
    %v406 = vld [vmem:[#allocation3 + $0x28] sm:$0xff]
    %v407 = vld [vmem:[#allocation3 + $0x30] sm:$0xff]
    %v408 = vld [vmem:[#allocation3 + $0x38] sm:$0xff]
    %v409 = vld [vmem:[#allocation3 + $0x40] sm:$0xff]
    %v410 = vld [vmem:[#allocation3 + $0x48] sm:$0xff]
    %v411 = vld [vmem:[#allocation3 + $0x50] sm:$0xff]
    %v412 = vld [vmem:[#allocation3 + $0x58] sm:$0xff]
    %v413 = vld [vmem:[#allocation3 + $0x60] sm:$0x33]
    %v414 = vld [vmem:[#allocation3 + $0x68] sm:$0x33]
    %v415 = vld [vmem:[#allocation3 + $0x70] sm:$0x33]
    %v416 = vld [vmem:[%s3] sm:$0xff]
    %418 = vset.pattern.permute.xlu0 0
    %419 = vperm.xlu0 %418, %v416
    %v420 = vpop.permute.xlu0 %419
    %v437 = vunpack.c.l.b16 %v401
    %v438 = vunpack.c.h.b16 %v401
    %v439 = vunpack.c.l.b16 %v402
    %v440 = vunpack.c.h.b16 %v402
    %v441 = vunpack.c.l.b16 %v403
    %v442 = vunpack.c.h.b16 %v403
    %v443 = vunpack.c.l.b16 %v404
    %v444 = vunpack.c.h.b16 %v404
    %v445 = vunpack.c.l.b16 %v405
    %v446 = vunpack.c.h.b16 %v405
    %v447 = vunpack.c.l.b16 %v406
    %v448 = vunpack.c.h.b16 %v406
    %v449 = vunpack.c.l.b16 %v407
    %v450 = vunpack.c.h.b16 %v407
    %v451 = vunpack.c.l.b16 %v408
    %v452 = vunpack.c.h.b16 %v408
    %v453 = vunpack.c.l.b16 %v409
    %v454 = vunpack.c.h.b16 %v409
    %v455 = vunpack.c.l.b16 %v410
    %v456 = vunpack.c.h.b16 %v410
    %v457 = vunpack.c.l.b16 %v411
    %v458 = vunpack.c.h.b16 %v411
    %v459 = vunpack.c.l.b16 %v412
    %v460 = vunpack.c.h.b16 %v412
    %v461 = vunpack.c.l.b16 %v413
    %v462 = vunpack.c.h.b16 %v413
    %v463 = vunpack.c.l.b16 %v414
    %v464 = vunpack.c.h.b16 %v414
    %v465 = vunpack.c.l.b16 %v415
    %v466 = vunpack.c.h.b16 %v415
    %v467 = vpack.c.b16 %v443, %v437
    %v468 = vpack.c.b16 %v444, %v438
    %v469 = vpack.c.b16 %v445, %v439
    %v470 = vpack.c.b16 %v446, %v440
    %v471 = vpack.c.b16 %v447, %v441
    %v472 = vpack.c.b16 %v448, %v442
    %v473 = vpack.c.b16 %v455, %v449
    %v474 = vpack.c.b16 %v456, %v450
    %v475 = vpack.c.b16 %v457, %v451
    %v476 = vpack.c.b16 %v458, %v452
    %v477 = vpack.c.b16 %v459, %v453
    %v478 = vpack.c.b16 %v460, %v454
    %v479 = vpack.c.b16 %v461, %v461
    %v480 = vpack.c.b16 %v462, %v462
    %v481 = vpack.c.b16 %v463, %v463
    %v482 = vpack.c.b16 %v464, %v464
    %v483 = vpack.c.b16 %v465, %v465
    %v484 = vpack.c.b16 %v466, %v466
    %vm497 = vcmask 293888
    %v499 = vsel %vm497, %v400, 0
    %vm501 = vcmask 1041408
    %v503 = vsel %vm501, %v479, 0
    %v506 = vsel %vm501, %v480, 0
    %v509 = vsel %vm501, %v481, 0
    %v512 = vsel %vm501, %v482, 0
    %v515 = vsel %vm501, %v483, 0
    %v518 = vsel %vm501, %v484, 0
    %520 = vmatpush.bf16.msra.mxu0 0
    %521 = vmatpush.bf16.msra.mxu0 0
    %522 = vmatpush.bf16.msra.mxu0 0
    %523 = vmatpush.bf16.msra.mxu0 0
    %524 = vmatpush.bf16.msra.mxu0 0
    %525 = vmatpush.bf16.msra.mxu0 %v503
    %526 = vmatpush.bf16.msra.mxu0 %v473
    %527 = vmatpush.bf16.msra.mxu0 %v467
    %528 = vmatmul.bf16.gmra.mxu0 %v499
    %v529 = vpop.f32.mrf.mxu0
    %v530 = vadd.f32 %v420, %v529
    %v531 = vpop.f32.mrf.mxu0
    %532 = vdwg.mxu0
    %533 = vmatpush.bf16.msra.mxu0 0
    %534 = vmatpush.bf16.msra.mxu0 0
    %535 = vmatpush.bf16.msra.mxu0 0
    %536 = vmatpush.bf16.msra.mxu0 0
    %537 = vmatpush.bf16.msra.mxu0 0
    %538 = vmatpush.bf16.msra.mxu0 %v506
    %539 = vmatpush.bf16.msra.mxu0 %v474
    %540 = vmatpush.bf16.msra.mxu0 %v468
    %541 = vmatmul.bf16.gmra.mxu0 %v499
    %v542 = vpop.f32.mrf.mxu0
    %v543 = vadd.f32 %v420, %v542
    %v544 = vpop.f32.mrf.mxu0
    %545 = vdwg.mxu0
    %546 = vmatpush.bf16.msra.mxu0 0
    %547 = vmatpush.bf16.msra.mxu0 0
    %548 = vmatpush.bf16.msra.mxu0 0
    %549 = vmatpush.bf16.msra.mxu0 0
    %550 = vmatpush.bf16.msra.mxu0 0
    %551 = vmatpush.bf16.msra.mxu0 %v509
    %552 = vmatpush.bf16.msra.mxu0 %v475
    %553 = vmatpush.bf16.msra.mxu0 %v469
    %554 = vmatmul.bf16.gmra.mxu0 %v499
    %v555 = vpop.f32.mrf.mxu0
    %v556 = vadd.f32 %v420, %v555
    %v557 = vpop.f32.mrf.mxu0
    %558 = vdwg.mxu0
    %559 = vmatpush.bf16.msra.mxu0 0
    %560 = vmatpush.bf16.msra.mxu0 0
    %561 = vmatpush.bf16.msra.mxu0 0
    %562 = vmatpush.bf16.msra.mxu0 0
    %563 = vmatpush.bf16.msra.mxu0 0
    %564 = vmatpush.bf16.msra.mxu0 %v512
    %565 = vmatpush.bf16.msra.mxu0 %v476
    %566 = vmatpush.bf16.msra.mxu0 %v470
    %567 = vmatmul.bf16.gmra.mxu0 %v499
    %v568 = vpop.f32.mrf.mxu0
    %v569 = vadd.f32 %v420, %v568
    %v570 = vpop.f32.mrf.mxu0
    %571 = vdwg.mxu0
    %572 = vmatpush.bf16.msra.mxu0 0
    %573 = vmatpush.bf16.msra.mxu0 0
    %574 = vmatpush.bf16.msra.mxu0 0
    %575 = vmatpush.bf16.msra.mxu0 0
    %576 = vmatpush.bf16.msra.mxu0 0
    %577 = vmatpush.bf16.msra.mxu0 %v515
    %578 = vmatpush.bf16.msra.mxu0 %v477
    %579 = vmatpush.bf16.msra.mxu0 %v471
    %580 = vmatmul.bf16.gmra.mxu0 %v499
    %v581 = vpop.f32.mrf.mxu0
    %v582 = vadd.f32 %v420, %v581
    %v583 = vpop.f32.mrf.mxu0
    %584 = vdwg.mxu0
    %585 = vmatpush.bf16.msra.mxu0 0
    %586 = vmatpush.bf16.msra.mxu0 0
    %587 = vmatpush.bf16.msra.mxu0 0
    %588 = vmatpush.bf16.msra.mxu0 0
    %589 = vmatpush.bf16.msra.mxu0 0
    %590 = vmatpush.bf16.msra.mxu0 %v518
    %591 = vmatpush.bf16.msra.mxu0 %v478
    %592 = vmatpush.bf16.msra.mxu0 %v472
    %593 = vmatmul.bf16.gmra.mxu0 %v499
    %v594 = vpop.f32.mrf.mxu0
    %v595 = vadd.f32 %v420, %v594
    %v596 = vpop.f32.mrf.mxu0
    %597 = vdwg.mxu0
    %598 = vst [vmem:[#allocation9] sm:$0xff] %v530
    %599 = vst [vmem:[#allocation9 + $0x8] sm:$0xff] %v543
    %600 = vst [vmem:[#allocation9 + $0x10] sm:$0xff] %v556
    %601 = vst [vmem:[#allocation9 + $0x18] sm:$0xff] %v569
    %602 = vst [vmem:[#allocation9 + $0x20] sm:$0xff] %v582
    %603 = vst [vmem:[#allocation9 + $0x28] sm:$0xff] %v595
    // Predicated region
    $region26: #{tpu_custom_call.1} parent=1 // pred_check
      _
    $region27: #{tpu_custom_call.1} parent=1 // pred_check_branch
      %605 = sbr.rel (0) target = $region29
    $region28: #{tpu_custom_call.1} parent=1 // pred_region
      %607 = vsyncadd [#allocation6], 0
      %s609 = sshll.u32 [#allocation9], 4
      %s610 = int_to_ptr.vmem [resolvable:$true] %s609
      %s611 = sshll.u32 %s4, 4
      %s612 = int_to_ptr.hbm [resolvable:$true] %s611
      %614 = dma.vmem_to_hbm [thread:$0]  %s610, 768, %s612, [#allocation6]
    $region29: #{tpu_custom_call.1} parent=1 // pred_fallthru
      _
    // Predicated region
    $region30: #{tpu_custom_call.1} parent=1 // pred_check
      _
    $region31: #{tpu_custom_call.1} parent=1 // pred_check_branch
      %616 = sbr.rel (0) target = $region33
    $region32: #{tpu_custom_call.1} parent=1 // pred_region
      %618 = dma.done [#allocation6], 768
    $region33: #{tpu_custom_call.1} parent=1 // pred_fallthru
      _
    %619 = vsyncpa [#allocation5], 1
    %620 = vsyncpa [#allocation8], 1
    %621 = vsyncpa [#allocation6], 1

</llo_original>
